<compile_context>
chip_gen: v5e
topology: v5e:2x2
jax: 0.10.0
libtpu: 0.0.40
codegen_flags: <defaults>
</compile_context>

<pallas_src>
import functools

import jax
import jax.numpy as jnp
from jax.experimental import pallas as pl
from jax.experimental.pallas import tpu as pltpu


def _round_up(x, m):
    return (x + m - 1) // m * m


def _edge_embedding_kernel(ida_ref, idc_ref, rbf_ref, tbl_ref, wr_ref, o_ref,
                           *, activation):
    """One (edge_tile, out_tile) tile.

    tbl = [h@Wa ; h@Wc] stacked along rows (2*nAtoms_p, out_tile).
    out = onehot([ida, idc + nAtoms_p]) @ tbl + rbf @ Wr
        = concat([h[ida], h[idc], rbf], -1) @ W        (mathematically exact)
    """
    ids_a = ida_ref[...]                       # (T, 1) int32
    ids_c = idc_ref[...]                       # (T, 1) int32
    tile = ids_a.shape[0]
    k2 = tbl_ref.shape[0]                      # 2 * nAtoms_p (static)
    half = k2 // 2
    cdt = tbl_ref.dtype

    # Combined one-hot dispatch matrix: columns [0, half) select h@Wa rows,
    # columns [half, 2*half) select h@Wc rows.  Exact row selection + sum on
    # the MXU in a single matmul.
    iota = jax.lax.broadcasted_iota(jnp.int32, (tile, k2), 1)
    dispatch = jnp.logical_or(iota == ids_a, iota == ids_c + half).astype(cdt)

    acc = jnp.dot(dispatch, tbl_ref[...], preferred_element_type=jnp.float32)
    acc = acc + jnp.dot(rbf_ref[...], wr_ref[...],
                        preferred_element_type=jnp.float32)

    if activation == "swish":
        # GemNet's ScaledSiLU: silu(x) / 0.6, applied on the f32 accumulator.
        acc = acc * jax.nn.sigmoid(acc) * (1.0 / 0.6)
    # activation is None by default (matches the PyTorch module default).

    o_ref[...] = acc.astype(o_ref.dtype)


def edge_embedding_forward(h, m_rbf, idnb_a, idnb_c, W, *,
                           activation=None, edge_tile=512, out_tile=None,
                           compute_dtype=None, out_dtype=None):
    """
    Args:
      h:      (nAtoms, atom_features)   atom embeddings
      m_rbf:  (nEdges, edge_features)   edge / rbf features
      idnb_a: (nEdges,) int             gather indices (source atoms)
      idnb_c: (nEdges,) int             gather indices (target atoms)
      W:      (2*atom_features + edge_features, out_features)  dense weight
    Returns:
      (nEdges, out_features)
    """
    n_atoms, atom_f = h.shape
    n_edges, edge_f = m_rbf.shape
    out_f = W.shape[1]
    assert W.shape[0] == 2 * atom_f + edge_f
    compute_dtype = compute_dtype or h.dtype
    out_dtype = out_dtype or h.dtype

    # Fold the two atom halves of the dense layer into tiny per-atom tables.
    w_a = W[:atom_f, :]
    w_c = W[atom_f:2 * atom_f, :]
    w_r = W[2 * atom_f:, :]
    hi = jax.lax.Precision.HIGHEST
    hwa = jnp.dot(h, w_a, precision=hi, preferred_element_type=jnp.float32)
    hwc = jnp.dot(h, w_c, precision=hi, preferred_element_type=jnp.float32)

    # TPU-friendly padded shapes.
    if out_tile is None:
        out_tile = min(512, _round_up(out_f, 128))
    out_tile = _round_up(out_tile, 128)
    out_f_p = _round_up(out_f, out_tile)      # lane-dense output stores
    n_atoms_p = _round_up(n_atoms, 8)         # sublane-aligned table halves
    n_edge_tiles = pl.cdiv(n_edges, edge_tile)
    n_out_tiles = out_f_p // out_tile
    n_edges_p = n_edge_tiles * edge_tile

    def pad2(x, rows, cols):
        return jnp.pad(x, ((0, rows - x.shape[0]), (0, cols - x.shape[1])))

    # Stacked atom table [h@Wa ; h@Wc], resident in VMEM across the grid.
    tbl = jnp.concatenate([pad2(hwa, n_atoms_p, out_f_p),
                           pad2(hwc, n_atoms_p, out_f_p)],
                          axis=0).astype(compute_dtype)
    wr_p = pad2(w_r, edge_f, out_f_p).astype(compute_dtype)
    rbf_p = pad2(m_rbf, n_edges_p, edge_f).astype(compute_dtype)

    def pad_idx(ix):
        ix = jnp.asarray(ix, dtype=jnp.int32)
        ix = jnp.pad(ix, (0, n_edges_p - n_edges))   # padded rows gather atom 0
        return ix.reshape(n_edges_p, 1)

    ida = pad_idx(idnb_a)
    idc = pad_idx(idnb_c)

    kernel = functools.partial(_edge_embedding_kernel, activation=activation)

    out = pl.pallas_call(
        kernel,
        out_shape=jax.ShapeDtypeStruct((n_edges_p, out_f_p), out_dtype),
        grid_spec=pltpu.PrefetchScalarGridSpec(
            num_scalar_prefetch=0,
            grid=(n_edge_tiles, n_out_tiles),
            in_specs=[
                pl.BlockSpec((edge_tile, 1), lambda i, j: (i, 0)),         # idnb_a
                pl.BlockSpec((edge_tile, 1), lambda i, j: (i, 0)),         # idnb_c
                pl.BlockSpec((edge_tile, edge_f), lambda i, j: (i, 0)),    # m_rbf
                pl.BlockSpec((2 * n_atoms_p, out_tile), lambda i, j: (0, j)),  # [h@Wa;h@Wc]
                pl.BlockSpec((edge_f, out_tile), lambda i, j: (0, j)),     # Wr
            ],
            out_specs=pl.BlockSpec((edge_tile, out_tile), lambda i, j: (i, j)),
        ),
        compiler_params=pltpu.CompilerParams(
            dimension_semantics=("parallel", "parallel"),  # shards across TCs
            vmem_limit_bytes=32 * 1024 * 1024,             # safe on v5e/v6e/v7x
        ),
    )(ida, idc, rbf_p, tbl, wr_p)

    return out[:n_edges, :out_f]


def edge_embedding_reference(h, m_rbf, idnb_a, idnb_c, W, activation=None):
    h_a = h[idnb_a]
    h_c = h[idnb_c]
    m_ca = jnp.concatenate([h_a, h_c, m_rbf], axis=-1)
    out = jnp.dot(m_ca, W, precision=jax.lax.Precision.HIGHEST)
    if activation == "swish":
        out = out * jax.nn.sigmoid(out) / 0.6
    return out


def _make_inputs(key, n_atoms, n_edges, atom_f, edge_f, out_f):
    k_h, k_rbf, k_w, k_a, k_c = jax.random.split(key, 5)
    h = jax.random.normal(k_h, (n_atoms, atom_f), dtype=jnp.float32)
    m_rbf = jax.random.normal(k_rbf, (n_edges, edge_f), dtype=jnp.float32)
    idnb_a = jax.random.randint(k_a, (n_edges,), 0, n_atoms, dtype=jnp.int32)
    idnb_c = jax.random.randint(k_c, (n_edges,), 0, n_atoms, dtype=jnp.int32)
    in_f = 2 * atom_f + edge_f
    W = jax.random.normal(k_w, (in_f, out_f), dtype=jnp.float32)
    W = W * (1.0 / jnp.sqrt(in_f))
    return h, m_rbf, idnb_a, idnb_c, W


if __name__ == "__main__":
    key = jax.random.PRNGKey(0)
    k1, k2 = jax.random.split(key)

    # ---- Test 1: module-consistent shapes, ragged edge tile -----------------
    h, m_rbf, ida, idc, W = _make_inputs(k1, n_atoms=40, n_edges=1000,
                                         atom_f=64, edge_f=16, out_f=128)
    ref = edge_embedding_reference(h, m_rbf, ida, idc, W, activation=None)

    out = edge_embedding_forward(h, m_rbf, ida, idc, W,
                                 activation=None, edge_tile=256)
    out = jax.block_until_ready(out)
    assert out.shape == (1000, 128)
    assert jnp.allclose(out, ref, atol=1e-4, rtol=1e-4), "f32 mismatch vs reference"

    # bf16 compute path (halved HBM/VMEM traffic, f32 MXU accumulation).
    out_bf16 = edge_embedding_forward(h, m_rbf, ida, idc, W,
                                      activation=None, edge_tile=256,
                                      compute_dtype=jnp.bfloat16,
                                      out_dtype=jnp.float32)
    out_bf16 = jax.block_until_ready(out_bf16)
    assert jnp.allclose(out_bf16, ref, atol=0.25, rtol=0.1), "bf16 mismatch"

    # ---- Test 2: non-128-aligned out_features + multiple output tiles -------
    h2, rbf2, ida2, idc2, W2 = _make_inputs(k2, n_atoms=21, n_edges=500,
                                            atom_f=32, edge_f=12, out_f=160)
    ref2 = edge_embedding_reference(h2, rbf2, ida2, idc2, W2, activation=None)
    out2 = edge_embedding_forward(h2, rbf2, ida2, idc2, W2,
                                  activation=None, edge_tile=256, out_tile=128)
    out2 = jax.block_until_ready(out2)
    assert out2.shape == (500, 160)
    assert jnp.allclose(out2, ref2, atol=1e-4, rtol=1e-4), "tiled-out mismatch"

    print("KERNEL_OK")
</pallas_src>

<mosaic_0001>
module attributes {stable_mosaic.version = 11 : i64} {
  func.func @_edge_embedding_kernel(%arg0: i32, %arg1: i32, %arg2: memref<256x1xi32, #tpu.memory_space<vmem>>, %arg3: memref<256x1xi32, #tpu.memory_space<vmem>>, %arg4: memref<256x16xf32, #tpu.memory_space<vmem>>, %arg5: memref<80x128xf32, #tpu.memory_space<vmem>>, %arg6: memref<16x128xf32, #tpu.memory_space<vmem>>, %arg7: memref<256x128xf32, #tpu.memory_space<vmem>>) attributes {dimension_semantics = [#tpu.dimension_semantics<parallel>, #tpu.dimension_semantics<parallel>], iteration_bounds = array<i64: 4, 1>, scalar_prefetch = 0 : i64, scratch_operands = 0 : i64, tpu.core_type = #tpu.core_type<tc>, window_params = [{transform_indices = @transform_0, window_bounds = array<i64: 256, 1>}, {transform_indices = @transform_1, window_bounds = array<i64: 256, 1>}, {transform_indices = @transform_2, window_bounds = array<i64: 256, 16>}, {transform_indices = @transform_3, window_bounds = array<i64: 80, 128>}, {transform_indices = @transform_4, window_bounds = array<i64: 16, 128>}, {transform_indices = @transform_5, window_bounds = array<i64: 256, 128>}]} {
    %c0 = arith.constant 0 : index
    %c0_0 = arith.constant 0 : index
    %0 = vector.load %arg2[%c0, %c0_0] : memref<256x1xi32, #tpu.memory_space<vmem>>, vector<256x1xi32>
    %c0_1 = arith.constant 0 : index
    %c0_2 = arith.constant 0 : index
    %1 = vector.load %arg3[%c0_1, %c0_2] : memref<256x1xi32, #tpu.memory_space<vmem>>, vector<256x1xi32>
    %2 = tpu.iota {dimensions = array<i32: 1>} : vector<256x80xi32>
    %3 = vector.broadcast %0 : vector<256x1xi32> to vector<256x80xi32>
    %4 = arith.cmpi eq, %2, %3 : vector<256x80xi32>
    %c40_i32 = arith.constant 40 : i32
    %5 = vector.broadcast %c40_i32 : i32 to vector<256x1xi32>
    %6 = arith.addi %1, %5 : vector<256x1xi32>
    %7 = vector.broadcast %6 : vector<256x1xi32> to vector<256x80xi32>
    %8 = arith.cmpi eq, %2, %7 : vector<256x80xi32>
    %9 = arith.ori %4, %8 : vector<256x80xi1>
    %10 = arith.extui %9 : vector<256x80xi1> to vector<256x80xi32>
    %11 = arith.sitofp %10 : vector<256x80xi32> to vector<256x80xf32>
    %c0_3 = arith.constant 0 : index
    %c0_4 = arith.constant 0 : index
    %12 = vector.load %arg5[%c0_3, %c0_4] : memref<80x128xf32, #tpu.memory_space<vmem>>, vector<80x128xf32>
    %cst = arith.constant dense<0.000000e+00> : vector<256x128xf32>
    %13 = tpu.matmul %11, %12, %cst {dimension_numbers = #tpu.dot_dimension_numbers<[1], [0], [0], [1], [0, 0, 1, 1], [], []>} : vector<256x80xf32>, vector<80x128xf32>, vector<256x128xf32> -> vector<256x128xf32>
    %c0_5 = arith.constant 0 : index
    %c0_6 = arith.constant 0 : index
    %14 = vector.load %arg4[%c0_5, %c0_6] : memref<256x16xf32, #tpu.memory_space<vmem>>, vector<256x16xf32>
    %c0_7 = arith.constant 0 : index
    %c0_8 = arith.constant 0 : index
    %15 = vector.load %arg6[%c0_7, %c0_8] : memref<16x128xf32, #tpu.memory_space<vmem>>, vector<16x128xf32>
    %cst_9 = arith.constant dense<0.000000e+00> : vector<256x128xf32>
    %16 = tpu.matmul %14, %15, %cst_9 {dimension_numbers = #tpu.dot_dimension_numbers<[1], [0], [0], [1], [0, 0, 1, 1], [], []>} : vector<256x16xf32>, vector<16x128xf32>, vector<256x128xf32> -> vector<256x128xf32>
    %17 = arith.addf %13, %16 : vector<256x128xf32>
    %c0_10 = arith.constant 0 : index
    %c0_11 = arith.constant 0 : index
    %18 = vector.load %arg7[%c0_10, %c0_11] : memref<256x128xf32, #tpu.memory_space<vmem>>, vector<256x128xf32>
    tpu.vector_store %arg7[%c0_10, %c0_11], %17 {strides = array<i32>} : memref<256x128xf32, #tpu.memory_space<vmem>>, vector<256x128xf32>,
    return
  }
  func.func @transform_0(%arg0: i32, %arg1: i32) -> (i32, i32) {
    %c0_i32 = arith.constant 0 : i32
    %c0_i32_0 = arith.constant 0 : i32
    return %arg0, %c0_i32 : i32, i32
  }
  func.func @transform_1(%arg0: i32, %arg1: i32) -> (i32, i32) {
    %c0_i32 = arith.constant 0 : i32
    %c0_i32_0 = arith.constant 0 : i32
    return %arg0, %c0_i32 : i32, i32
  }
  func.func @transform_2(%arg0: i32, %arg1: i32) -> (i32, i32) {
    %c0_i32 = arith.constant 0 : i32
    %c0_i32_0 = arith.constant 0 : i32
    return %arg0, %c0_i32 : i32, i32
  }
  func.func @transform_3(%arg0: i32, %arg1: i32) -> (i32, i32) {
    %c0_i32 = arith.constant 0 : i32
    %c0_i32_0 = arith.constant 0 : i32
    return %c0_i32, %arg1 : i32, i32
  }
  func.func @transform_4(%arg0: i32, %arg1: i32) -> (i32, i32) {
    %c0_i32 = arith.constant 0 : i32
    %c0_i32_0 = arith.constant 0 : i32
    return %c0_i32, %arg1 : i32, i32
  }
  func.func @transform_5(%arg0: i32, %arg1: i32) -> (i32, i32) {
    %c0_i32 = arith.constant 0 : i32
    return %arg0, %arg1 : i32, i32
  }
}

</mosaic_0001>

<llo_original>
// kernel: tpu_custom_call.1
$region0: #{tpu_custom_call.1}
  #allocation0 [shape = 'u32[]', space=smem, size = 0x4, offset = 0x4, fixed_abs, tag = 'smem constant byte address 0x4 - core index']
  #allocation1 [shape = 'u32[72,128]{1,0:T(1,128)}', space=vmem, size = 0x9000, scoped, tag = 'internal scratch']
  %s0 = inlined_call_operand.vmem [shape: s32[1024,1], index: 0, kind: input, shape index: {}]
  %s1 = inlined_call_operand.vmem [shape: s32[1024,1], index: 1, kind: input, shape index: {}]
  %s2 = inlined_call_operand.vmem [shape: f32[1024,16], index: 2, kind: input, shape index: {}]
  %s3 = inlined_call_operand.vmem [shape: f32[80,128], index: 3, kind: input, shape index: {}]
  %s4 = inlined_call_operand.vmem [shape: f32[16,128], index: 4, kind: input, shape index: {}]
  %s5 = inlined_call_operand.hbm [shape: f32[1024,128], index: 5, kind: output, shape index: {}]
  %s6 = sld [smem:[#allocation0]]
  $region53: #{tpu_custom_call.1} parent=0
    _
  %s8 = ssub.s32 1, %s6
  %s9 = scalar_select 0, %s8, %s6
  $region1: #{tpu_custom_call.1} parent=0
    #allocation2 [shape = 'u8[262144]{0}', space=vmem, size = 0x40000, scoped, tag = 'output window, operand 0']
    #allocation3 [shape = 's32[2]{0}', space=sflag, size = 0x8, scoped, tag = 'scoped memory for tpu_custom_call.1']
    %10 = vsyncpa [#allocation3], 0
    %s11 = scalar_lea.sflag [#allocation3], 1
    %12 = vsyncpa %s11, 0
    loop: start=0, step=1, limit=6
    $region2: #{tpu_custom_call.1} parent=1 // loop_pre_header
      _
    $region3: #{tpu_custom_call.1} parent=1 // loop_header
      %s14 = sphi 0, %s18
      %p15 = scmp.ge.s32.totalorder %s14, 6
      %s21 = sphi 0, %s33
      %s22 = sphi 0, %s29
      %s23 = sphi 0, %s21
      %s24 = sphi 0, %s22
      %s25 = sphi 0, %s23
      %s26 = sphi 0, %s24
      %s36 = sphi 0, %s38
      %s39 = sphi 0, %s36
      %s40 = sphi 0, %s39
      %s56 = sphi 0, %s40
      %s62 = sphi 0, %s64
      %s65 = sphi 0, %s62
      %s66 = sphi 0, %s65
      %s82 = sphi 0, %s66
      %s88 = sphi 0, %s90
      %s91 = sphi 0, %s88
      %s92 = sphi 0, %s91
      %s108 = sphi 0, %s92
      %s114 = sphi 0, %s116
      %s117 = sphi 0, %s114
      %s118 = sphi 0, %s117
      %s134 = sphi 0, %s118
      %s140 = sphi 0, %s142
      %s143 = sphi 0, %s140
      %s144 = sphi 0, %s143
      %s160 = sphi 0, %s144
      %s168 = sphi 0, %s170
      %s171 = sphi 0, %s168
      %s172 = sphi 0, %s171
      %s188 = sphi 0, %s172
    $region4: #{tpu_custom_call.1} parent=1 // loop_header_branch
      %17 = sbr.rel (%p15) target = $region8
    $region5: #{tpu_custom_call.1} parent=1 // loop_body
      %s19 = ssub.s32 %s14, 1
      %s20 = ssub.s32 %s14, 2
      %s27 = sadd.s32 1, %s22
      %p28 = scmp.ge.s32.totalorder %s27, 1
      %s29 = scalar_select %p28, 0, %s27
      %s30 = sadd.s32 1, %s21
      %s31 = scalar_select %p28, %s30, %s21
      %p32 = scmp.ge.s32.totalorder %s31, 4
      %s33 = scalar_select %p32, 0, %s31
      %s34 = ssub.s32 %s21, %s33
      %p35 = scmp.eq.s32.totalorder %s34, 0
      %s37 = sadd.s32 %s36, 1
      %s38 = scalar_select %p35, %s36, %s37
      %p41 = pneg %p35
      %p42 = scmp.eq.s32.totalorder %s14, 3
      %p43 = por %p41, %p42
      %p44 = scmp.ne.s32.totalorder %s36, %s39
      %p45 = scmp.eq.s32.totalorder %s14, 0
      %p46 = por %p44, %p45
      %p47 = scmp.ne.s32.totalorder %s36, %s39
      %p48 = scmp.eq.s32.totalorder %s19, 3
      %p49 = por %p47, %p48
      %p50 = scmp.ne.s32.totalorder %s39, %s40
      %p51 = scmp.eq.s32.totalorder %s19, 0
      %p52 = por %p50, %p51
      %p53 = scmp.ne.s32.totalorder %s39, %s40
      %p54 = scmp.eq.s32.totalorder %s20, 3
      %p55 = por %p53, %p54
      %p57 = scmp.ne.s32.totalorder %s40, %s56
      %p58 = scmp.eq.s32.totalorder %s20, 0
      %p59 = por %p57, %p58
      %s60 = ssub.s32 %s21, %s33
      %p61 = scmp.eq.s32.totalorder %s60, 0
      %s63 = sadd.s32 %s62, 1
      %s64 = scalar_select %p61, %s62, %s63
      %p67 = pneg %p61
      %p68 = scmp.eq.s32.totalorder %s14, 3
      %p69 = por %p67, %p68
      %p70 = scmp.ne.s32.totalorder %s62, %s65
      %p71 = scmp.eq.s32.totalorder %s14, 0
      %p72 = por %p70, %p71
      %p73 = scmp.ne.s32.totalorder %s62, %s65
      %p74 = scmp.eq.s32.totalorder %s19, 3
      %p75 = por %p73, %p74
      %p76 = scmp.ne.s32.totalorder %s65, %s66
      %p77 = scmp.eq.s32.totalorder %s19, 0
      %p78 = por %p76, %p77
      %p79 = scmp.ne.s32.totalorder %s65, %s66
      %p80 = scmp.eq.s32.totalorder %s20, 3
      %p81 = por %p79, %p80
      %p83 = scmp.ne.s32.totalorder %s66, %s82
      %p84 = scmp.eq.s32.totalorder %s20, 0
      %p85 = por %p83, %p84
      %s86 = ssub.s32 %s21, %s33
      %p87 = scmp.eq.s32.totalorder %s86, 0
      %s89 = sadd.s32 %s88, 1
      %s90 = scalar_select %p87, %s88, %s89
      %p93 = pneg %p87
      %p94 = scmp.eq.s32.totalorder %s14, 3
      %p95 = por %p93, %p94
      %p96 = scmp.ne.s32.totalorder %s88, %s91
      %p97 = scmp.eq.s32.totalorder %s14, 0
      %p98 = por %p96, %p97
      %p99 = scmp.ne.s32.totalorder %s88, %s91
      %p100 = scmp.eq.s32.totalorder %s19, 3
      %p101 = por %p99, %p100
      %p102 = scmp.ne.s32.totalorder %s91, %s92
      %p103 = scmp.eq.s32.totalorder %s19, 0
      %p104 = por %p102, %p103
      %p105 = scmp.ne.s32.totalorder %s91, %s92
      %p106 = scmp.eq.s32.totalorder %s20, 3
      %p107 = por %p105, %p106
      %p109 = scmp.ne.s32.totalorder %s92, %s108
      %p110 = scmp.eq.s32.totalorder %s20, 0
      %p111 = por %p109, %p110
      %s112 = ssub.s32 %s22, %s29
      %p113 = scmp.eq.s32.totalorder %s112, 0
      %s115 = sadd.s32 %s114, 1
      %s116 = scalar_select %p113, %s114, %s115
      %p119 = pneg %p113
      %p120 = scmp.eq.s32.totalorder %s14, 3
      %p121 = por %p119, %p120
      %p122 = scmp.ne.s32.totalorder %s114, %s117
      %p123 = scmp.eq.s32.totalorder %s14, 0
      %p124 = por %p122, %p123
      %p125 = scmp.ne.s32.totalorder %s114, %s117
      %p126 = scmp.eq.s32.totalorder %s19, 3
      %p127 = por %p125, %p126
      %p128 = scmp.ne.s32.totalorder %s117, %s118
      %p129 = scmp.eq.s32.totalorder %s19, 0
      %p130 = por %p128, %p129
      %p131 = scmp.ne.s32.totalorder %s117, %s118
      %p132 = scmp.eq.s32.totalorder %s20, 3
      %p133 = por %p131, %p132
      %p135 = scmp.ne.s32.totalorder %s118, %s134
      %p136 = scmp.eq.s32.totalorder %s20, 0
      %p137 = por %p135, %p136
      %s138 = ssub.s32 %s22, %s29
      %p139 = scmp.eq.s32.totalorder %s138, 0
      %s141 = sadd.s32 %s140, 1
      %s142 = scalar_select %p139, %s140, %s141
      %p145 = pneg %p139
      %p146 = scmp.eq.s32.totalorder %s14, 3
      %p147 = por %p145, %p146
      %p148 = scmp.ne.s32.totalorder %s140, %s143
      %p149 = scmp.eq.s32.totalorder %s14, 0
      %p150 = por %p148, %p149
      %p151 = scmp.ne.s32.totalorder %s140, %s143
      %p152 = scmp.eq.s32.totalorder %s19, 3
      %p153 = por %p151, %p152
      %p154 = scmp.ne.s32.totalorder %s143, %s144
      %p155 = scmp.eq.s32.totalorder %s19, 0
      %p156 = por %p154, %p155
      %p157 = scmp.ne.s32.totalorder %s143, %s144
      %p158 = scmp.eq.s32.totalorder %s20, 3
      %p159 = por %p157, %p158
      %p161 = scmp.ne.s32.totalorder %s144, %s160
      %p162 = scmp.eq.s32.totalorder %s20, 0
      %p163 = por %p161, %p162
      %s164 = ssub.s32 %s21, %s33
      %s165 = ssub.s32 %s22, %s29
      %s166 = sor.u32 %s164, %s165
      %p167 = scmp.eq.s32.totalorder %s166, 0
      %s169 = sadd.s32 %s168, 1
      %s170 = scalar_select %p167, %s168, %s169
      %p173 = pneg %p167
      %p174 = scmp.eq.s32.totalorder %s14, 3
      %p175 = por %p173, %p174
      %p176 = scmp.ne.s32.totalorder %s168, %s171
      %p177 = scmp.eq.s32.totalorder %s14, 0
      %p178 = por %p176, %p177
      %p179 = scmp.ne.s32.totalorder %s168, %s171
      %p180 = scmp.eq.s32.totalorder %s19, 3
      %p181 = por %p179, %p180
      %p182 = scmp.ne.s32.totalorder %s171, %s172
      %p183 = scmp.eq.s32.totalorder %s19, 0
      %p184 = por %p182, %p183
      %p185 = scmp.ne.s32.totalorder %s171, %s172
      %p186 = scmp.eq.s32.totalorder %s20, 3
      %p187 = por %p185, %p186
      %p189 = scmp.ne.s32.totalorder %s172, %s188
      %p190 = scmp.eq.s32.totalorder %s20, 0
      %p191 = por %p189, %p190
      %p192 = scmp.le.s32.totalorder 1, %s14
      %p193 = scmp.lt.s32.totalorder %s14, 5
      %p194 = pnand %p192, %p193
      %p195 = pneg %p194
      // Predicated region
      $region9: #{tpu_custom_call.1} parent=5 // pred_check
        _
      $region10: #{tpu_custom_call.1} parent=5 // pred_check_branch
        %197 = sbr.rel (%p194) target = $region12
      $region11: #{tpu_custom_call.1} parent=5 // pred_region
        %s198 = ssub.s32 %s14, 1
        // Predicated region
        $region13: #{tpu_custom_call.1} parent=11 // pred_check
          %p199 = pneg %p130
        $region14: #{tpu_custom_call.1} parent=11 // pred_check_branch
          %201 = sbr.rel (%p199) target = $region16
        $region15: #{tpu_custom_call.1} parent=11 // pred_region
          %p202 = scmp.lt.s32.totalorder %s24, 0
          %s203 = scalar_select %p202, %s24, 0
          %s204 = smul.addr %s203, 8
          %s205 = scalar_lea.vmem %s3, %s204
        $region16: #{tpu_custom_call.1} parent=11 // pred_fallthru
          _
        // Predicated region
        $region17: #{tpu_custom_call.1} parent=11 // pred_check
          %p206 = pneg %p156
        $region18: #{tpu_custom_call.1} parent=11 // pred_check_branch
          %208 = sbr.rel (%p206) target = $region20
        $region19: #{tpu_custom_call.1} parent=11 // pred_region
          %p209 = scmp.lt.s32.totalorder %s24, 0
          %s210 = scalar_select %p209, %s24, 0
          %s211 = smul.addr %s210, 8
          %s212 = scalar_lea.vmem %s4, %s211
        $region20: #{tpu_custom_call.1} parent=11 // pred_fallthru
          _
      $region12: #{tpu_custom_call.1} parent=5 // pred_fallthru
        _
      %p213 = scmp.lt.s32.totalorder %s14, 4
      // Predicated region
      $region21: #{tpu_custom_call.1} parent=5 // pred_check
        %p214 = pneg %p213
      $region22: #{tpu_custom_call.1} parent=5 // pred_check_branch
        %216 = sbr.rel (%p214) target = $region24
      $region23: #{tpu_custom_call.1} parent=5 // pred_region
        // Predicated region
        $region25: #{tpu_custom_call.1} parent=23 // pred_check
          %p217 = pneg %p46
        $region26: #{tpu_custom_call.1} parent=23 // pred_check_branch
          %219 = sbr.rel (%p217) target = $region28
        $region27: #{tpu_custom_call.1} parent=23 // pred_region
          %s220 = smul.u32 32, %s21
          %p221 = scmp.lt.s32.totalorder %s220, 127
          %s222 = scalar_select %p221, %s220, 127
          %s223 = smul.addr %s222, 8
          %s224 = scalar_lea.vmem %s0, %s223
          %s225 = smul.u32 32, %s21
        $region28: #{tpu_custom_call.1} parent=23 // pred_fallthru
          _
        // Predicated region
        $region29: #{tpu_custom_call.1} parent=23 // pred_check
          %p226 = pneg %p72
        $region30: #{tpu_custom_call.1} parent=23 // pred_check_branch
          %228 = sbr.rel (%p226) target = $region32
        $region31: #{tpu_custom_call.1} parent=23 // pred_region
          %s229 = smul.u32 32, %s21
          %p230 = scmp.lt.s32.totalorder %s229, 127
          %s231 = scalar_select %p230, %s229, 127
          %s232 = smul.addr %s231, 8
          %s233 = scalar_lea.vmem %s1, %s232
          %s234 = smul.u32 32, %s21
        $region32: #{tpu_custom_call.1} parent=23 // pred_fallthru
          _
        // Predicated region
        $region33: #{tpu_custom_call.1} parent=23 // pred_check
          %p235 = pneg %p98
        $region34: #{tpu_custom_call.1} parent=23 // pred_check_branch
          %237 = sbr.rel (%p235) target = $region36
        $region35: #{tpu_custom_call.1} parent=23 // pred_region
          %s238 = smul.u32 32, %s21
          %p239 = scmp.lt.s32.totalorder %s238, 127
          %s240 = scalar_select %p239, %s238, 127
          %s241 = smul.addr %s240, 8
          %s242 = scalar_lea.vmem %s2, %s241
          %s243 = smul.u32 32, %s21
        $region36: #{tpu_custom_call.1} parent=23 // pred_fallthru
          _
      $region24: #{tpu_custom_call.1} parent=5 // pred_fallthru
        _
      %p244 = scmp.le.s32.totalorder 1, %s14
      %p245 = scmp.lt.s32.totalorder %s14, 5
      %p246 = pnand %p244, %p245
      %p247 = pneg %p246
      // Predicated region
      $region37: #{tpu_custom_call.1} parent=5 // pred_check
        _
      $region38: #{tpu_custom_call.1} parent=5 // pred_check_branch
        %249 = sbr.rel (%p246) target = $region40
      $region39: #{tpu_custom_call.1} parent=5 // pred_region
        %s250 = ssub.s32 %s14, 1
        %s251 = smul.u32 32, %s23
        %p252 = scmp.lt.s32.totalorder %s251, 127
        %s253 = scalar_select %p252, %s251, 127
        %s254 = smul.addr %s253, 8
        %s255 = scalar_lea.vmem %s0, %s254
        %p256 = pneg %p52
        %p257 = pneg %p49
        %s258 = smul.u32 32, %s23
        %p259 = scmp.lt.s32.totalorder %s258, 127
        %s260 = scalar_select %p259, %s258, 127
        %s261 = smul.addr %s260, 8
        %s262 = scalar_lea.vmem %s1, %s261
        %p263 = pneg %p78
        %p264 = pneg %p75
        %s265 = smul.u32 32, %s23
        %p266 = scmp.lt.s32.totalorder %s265, 127
        %s267 = scalar_select %p266, %s265, 127
        %s268 = smul.addr %s267, 8
        %s269 = scalar_lea.vmem %s2, %s268
        %p270 = pneg %p104
        %p271 = pneg %p101
        %p272 = scmp.lt.s32.totalorder %s24, 0
        %s273 = scalar_select %p272, %s24, 0
        %s274 = smul.addr %s273, 8
        %s275 = scalar_lea.vmem %s3, %s274
        %p276 = pneg %p130
        %p277 = pneg %p127
        %p278 = scmp.lt.s32.totalorder %s24, 0
        %s279 = scalar_select %p278, %s24, 0
        %s280 = smul.addr %s279, 8
        %s281 = scalar_lea.vmem %s4, %s280
        %p282 = pneg %p156
        %p283 = pneg %p153
        %p284 = pneg %p184
        %p285 = pneg %p181
        %s286 = sand.u32 %s171, 1
        %s287 = scalar_lea.sflag [#allocation3], %s286
        %s288 = sand.u32 %s171, 1
        %s289 = smul.addr %s288, 256
        %s290 = scalar_lea.vmem [#allocation2], %s289
        %s291 = smul.u32 32, %s23
        %p292 = scmp.lt.s32.totalorder %s291, 127
        %s293 = scalar_select %p292, %s291, 127
        %s294 = smul.addr %s293, 8
        %s295 = scalar_lea.vmem %s0, %s294
        %s296 = smul.u32 32, %s23
        %s297 = smul.u32 32, %s23
        %p298 = scmp.lt.s32.totalorder %s297, 127
        %s299 = scalar_select %p298, %s297, 127
        %s300 = smul.addr %s299, 8
        %s301 = scalar_lea.vmem %s1, %s300
        %s302 = smul.u32 32, %s23
        %s303 = smul.u32 32, %s23
        %p304 = scmp.lt.s32.totalorder %s303, 127
        %s305 = scalar_select %p304, %s303, 127
        %s306 = smul.addr %s305, 8
        %s307 = scalar_lea.vmem %s2, %s306
        %s308 = smul.u32 32, %s23
        %p309 = scmp.lt.s32.totalorder %s24, 0
        %s310 = scalar_select %p309, %s24, 0
        %s311 = smul.addr %s310, 8
        %s312 = scalar_lea.vmem %s3, %s311
        %p313 = scmp.lt.s32.totalorder %s24, 0
        %s314 = scalar_select %p313, %s24, 0
        %s315 = smul.addr %s314, 8
        %s316 = scalar_lea.vmem %s4, %s315
        %s317 = smul.u32 32, %s23
        %v318 = vld [vmem:[%s295] sm:$0xff]
        %v319 = vld [vmem:[%s295 + $0x8] sm:$0xff]
        %v320 = vld [vmem:[%s295 + $0x10] sm:$0xff]
        %v321 = vld [vmem:[%s295 + $0x18] sm:$0xff]
        %v322 = vld [vmem:[%s295 + $0x20] sm:$0xff]
        %v323 = vld [vmem:[%s295 + $0x28] sm:$0xff]
        %v324 = vld [vmem:[%s295 + $0x30] sm:$0xff]
        %v325 = vld [vmem:[%s295 + $0x38] sm:$0xff]
        %v326 = vld [vmem:[%s295 + $0x40] sm:$0xff]
        %v327 = vld [vmem:[%s295 + $0x48] sm:$0xff]
        %v328 = vld [vmem:[%s295 + $0x50] sm:$0xff]
        %v329 = vld [vmem:[%s295 + $0x58] sm:$0xff]
        %v330 = vld [vmem:[%s295 + $0x60] sm:$0xff]
        %v331 = vld [vmem:[%s295 + $0x68] sm:$0xff]
        %v332 = vld [vmem:[%s295 + $0x70] sm:$0xff]
        %v333 = vld [vmem:[%s295 + $0x78] sm:$0xff]
        %v334 = vld [vmem:[%s295 + $0x80] sm:$0xff]
        %v335 = vld [vmem:[%s295 + $0x88] sm:$0xff]
        %v336 = vld [vmem:[%s295 + $0x90] sm:$0xff]
        %v337 = vld [vmem:[%s295 + $0x98] sm:$0xff]
        %v338 = vld [vmem:[%s295 + $0xa0] sm:$0xff]
        %v339 = vld [vmem:[%s295 + $0xa8] sm:$0xff]
        %v340 = vld [vmem:[%s295 + $0xb0] sm:$0xff]
        %v341 = vld [vmem:[%s295 + $0xb8] sm:$0xff]
        %v342 = vld [vmem:[%s295 + $0xc0] sm:$0xff]
        %v343 = vld [vmem:[%s295 + $0xc8] sm:$0xff]
        %v344 = vld [vmem:[%s295 + $0xd0] sm:$0xff]
        %v345 = vld [vmem:[%s295 + $0xd8] sm:$0xff]
        %v346 = vld [vmem:[%s295 + $0xe0] sm:$0xff]
        %v347 = vld [vmem:[%s295 + $0xe8] sm:$0xff]
        %v348 = vld [vmem:[%s295 + $0xf0] sm:$0xff]
        %v349 = vld [vmem:[%s295 + $0xf8] sm:$0xff]
        %v350 = vld [vmem:[%s301] sm:$0xff]
        %v351 = vld [vmem:[%s301 + $0x8] sm:$0xff]
        %v352 = vld [vmem:[%s301 + $0x10] sm:$0xff]
        %v353 = vld [vmem:[%s301 + $0x18] sm:$0xff]
        %v354 = vld [vmem:[%s301 + $0x20] sm:$0xff]
        %v355 = vld [vmem:[%s301 + $0x28] sm:$0xff]
        %v356 = vld [vmem:[%s301 + $0x30] sm:$0xff]
        %v357 = vld [vmem:[%s301 + $0x38] sm:$0xff]
        %v358 = vld [vmem:[%s301 + $0x40] sm:$0xff]
        %v359 = vld [vmem:[%s301 + $0x48] sm:$0xff]
        %v360 = vld [vmem:[%s301 + $0x50] sm:$0xff]
        %v361 = vld [vmem:[%s301 + $0x58] sm:$0xff]
        %v362 = vld [vmem:[%s301 + $0x60] sm:$0xff]
        %v363 = vld [vmem:[%s301 + $0x68] sm:$0xff]
        %v364 = vld [vmem:[%s301 + $0x70] sm:$0xff]
        %v365 = vld [vmem:[%s301 + $0x78] sm:$0xff]
        %v366 = vld [vmem:[%s301 + $0x80] sm:$0xff]
        %v367 = vld [vmem:[%s301 + $0x88] sm:$0xff]
        %v368 = vld [vmem:[%s301 + $0x90] sm:$0xff]
        %v369 = vld [vmem:[%s301 + $0x98] sm:$0xff]
        %v370 = vld [vmem:[%s301 + $0xa0] sm:$0xff]
        %v371 = vld [vmem:[%s301 + $0xa8] sm:$0xff]
        %v372 = vld [vmem:[%s301 + $0xb0] sm:$0xff]
        %v373 = vld [vmem:[%s301 + $0xb8] sm:$0xff]
        %v374 = vld [vmem:[%s301 + $0xc0] sm:$0xff]
        %v375 = vld [vmem:[%s301 + $0xc8] sm:$0xff]
        %v376 = vld [vmem:[%s301 + $0xd0] sm:$0xff]
        %v377 = vld [vmem:[%s301 + $0xd8] sm:$0xff]
        %v378 = vld [vmem:[%s301 + $0xe0] sm:$0xff]
        %v379 = vld [vmem:[%s301 + $0xe8] sm:$0xff]
        %v380 = vld [vmem:[%s301 + $0xf0] sm:$0xff]
        %v381 = vld [vmem:[%s301 + $0xf8] sm:$0xff]
        %v382 = vlaneseq
        %v383 = vand.u32 %v382, 127
        %384 = vset.pattern.permute.xlu0 0
        %385 = vperm.xlu0 %384, %v318
        %v386 = vpop.permute.xlu0 %385
        %387 = vset.pattern.permute.xlu0 0
        %388 = vperm.xlu0 %387, %v319
        %v389 = vpop.permute.xlu0 %388
        %390 = vset.pattern.permute.xlu0 0
        %391 = vperm.xlu0 %390, %v320
        %v392 = vpop.permute.xlu0 %391
        %393 = vset.pattern.permute.xlu0 0
        %394 = vperm.xlu0 %393, %v321
        %v395 = vpop.permute.xlu0 %394
        %396 = vset.pattern.permute.xlu0 0
        %397 = vperm.xlu0 %396, %v322
        %v398 = vpop.permute.xlu0 %397
        %399 = vset.pattern.permute.xlu0 0
        %400 = vperm.xlu0 %399, %v323
        %v401 = vpop.permute.xlu0 %400
        %402 = vset.pattern.permute.xlu0 0
        %403 = vperm.xlu0 %402, %v324
        %v404 = vpop.permute.xlu0 %403
        %405 = vset.pattern.permute.xlu0 0
        %406 = vperm.xlu0 %405, %v325
        %v407 = vpop.permute.xlu0 %406
        %408 = vset.pattern.permute.xlu0 0
        %409 = vperm.xlu0 %408, %v326
        %v410 = vpop.permute.xlu0 %409
        %411 = vset.pattern.permute.xlu0 0
        %412 = vperm.xlu0 %411, %v327
        %v413 = vpop.permute.xlu0 %412
        %414 = vset.pattern.permute.xlu0 0
        %415 = vperm.xlu0 %414, %v328
        %v416 = vpop.permute.xlu0 %415
        %417 = vset.pattern.permute.xlu0 0
        %418 = vperm.xlu0 %417, %v329
        %v419 = vpop.permute.xlu0 %418
        %420 = vset.pattern.permute.xlu0 0
        %421 = vperm.xlu0 %420, %v330
        %v422 = vpop.permute.xlu0 %421
        %423 = vset.pattern.permute.xlu0 0
        %424 = vperm.xlu0 %423, %v331
        %v425 = vpop.permute.xlu0 %424
        %426 = vset.pattern.permute.xlu0 0
        %427 = vperm.xlu0 %426, %v332
        %v428 = vpop.permute.xlu0 %427
        %429 = vset.pattern.permute.xlu0 0
        %430 = vperm.xlu0 %429, %v333
        %v431 = vpop.permute.xlu0 %430
        %432 = vset.pattern.permute.xlu0 0
        %433 = vperm.xlu0 %432, %v334
        %v434 = vpop.permute.xlu0 %433
        %435 = vset.pattern.permute.xlu0 0
        %436 = vperm.xlu0 %435, %v335
        %v437 = vpop.permute.xlu0 %436
        %438 = vset.pattern.permute.xlu0 0
        %439 = vperm.xlu0 %438, %v336
        %v440 = vpop.permute.xlu0 %439
        %441 = vset.pattern.permute.xlu0 0
        %442 = vperm.xlu0 %441, %v337
        %v443 = vpop.permute.xlu0 %442
        %444 = vset.pattern.permute.xlu0 0
        %445 = vperm.xlu0 %444, %v338
        %v446 = vpop.permute.xlu0 %445
        %447 = vset.pattern.permute.xlu0 0
        %448 = vperm.xlu0 %447, %v339
        %v449 = vpop.permute.xlu0 %448
        %450 = vset.pattern.permute.xlu0 0
        %451 = vperm.xlu0 %450, %v340
        %v452 = vpop.permute.xlu0 %451
        %453 = vset.pattern.permute.xlu0 0
        %454 = vperm.xlu0 %453, %v341
        %v455 = vpop.permute.xlu0 %454
        %456 = vset.pattern.permute.xlu0 0
        %457 = vperm.xlu0 %456, %v342
        %v458 = vpop.permute.xlu0 %457
        %459 = vset.pattern.permute.xlu0 0
        %460 = vperm.xlu0 %459, %v343
        %v461 = vpop.permute.xlu0 %460
        %462 = vset.pattern.permute.xlu0 0
        %463 = vperm.xlu0 %462, %v344
        %v464 = vpop.permute.xlu0 %463
        %465 = vset.pattern.permute.xlu0 0
        %466 = vperm.xlu0 %465, %v345
        %v467 = vpop.permute.xlu0 %466
        %468 = vset.pattern.permute.xlu0 0
        %469 = vperm.xlu0 %468, %v346
        %v470 = vpop.permute.xlu0 %469
        %471 = vset.pattern.permute.xlu0 0
        %472 = vperm.xlu0 %471, %v347
        %v473 = vpop.permute.xlu0 %472
        %474 = vset.pattern.permute.xlu0 0
        %475 = vperm.xlu0 %474, %v348
        %v476 = vpop.permute.xlu0 %475
        %477 = vset.pattern.permute.xlu0 0
        %478 = vperm.xlu0 %477, %v349
        %v479 = vpop.permute.xlu0 %478
        %vm480 = vcmp.eq.s32.totalorder %v383, %v386
        %vm481 = vcmp.eq.s32.totalorder %v383, %v389
        %vm482 = vcmp.eq.s32.totalorder %v383, %v392
        %vm483 = vcmp.eq.s32.totalorder %v383, %v395
        %vm484 = vcmp.eq.s32.totalorder %v383, %v398
        %vm485 = vcmp.eq.s32.totalorder %v383, %v401
        %vm486 = vcmp.eq.s32.totalorder %v383, %v404
        %vm487 = vcmp.eq.s32.totalorder %v383, %v407
        %vm488 = vcmp.eq.s32.totalorder %v383, %v410
        %vm489 = vcmp.eq.s32.totalorder %v383, %v413
        %vm490 = vcmp.eq.s32.totalorder %v383, %v416
        %vm491 = vcmp.eq.s32.totalorder %v383, %v419
        %vm492 = vcmp.eq.s32.totalorder %v383, %v422
        %vm493 = vcmp.eq.s32.totalorder %v383, %v425
        %vm494 = vcmp.eq.s32.totalorder %v383, %v428
        %vm495 = vcmp.eq.s32.totalorder %v383, %v431
        %vm496 = vcmp.eq.s32.totalorder %v383, %v434
        %vm497 = vcmp.eq.s32.totalorder %v383, %v437
        %vm498 = vcmp.eq.s32.totalorder %v383, %v440
        %vm499 = vcmp.eq.s32.totalorder %v383, %v443
        %vm500 = vcmp.eq.s32.totalorder %v383, %v446
        %vm501 = vcmp.eq.s32.totalorder %v383, %v449
        %vm502 = vcmp.eq.s32.totalorder %v383, %v452
        %vm503 = vcmp.eq.s32.totalorder %v383, %v455
        %vm504 = vcmp.eq.s32.totalorder %v383, %v458
        %vm505 = vcmp.eq.s32.totalorder %v383, %v461
        %vm506 = vcmp.eq.s32.totalorder %v383, %v464
        %vm507 = vcmp.eq.s32.totalorder %v383, %v467
        %vm508 = vcmp.eq.s32.totalorder %v383, %v470
        %vm509 = vcmp.eq.s32.totalorder %v383, %v473
        %vm510 = vcmp.eq.s32.totalorder %v383, %v476
        %vm511 = vcmp.eq.s32.totalorder %v383, %v479
        %v512 = vadd.s32 %v350, 40
        %v513 = vadd.s32 %v351, 40
        %v514 = vadd.s32 %v352, 40
        %v515 = vadd.s32 %v353, 40
        %v516 = vadd.s32 %v354, 40
        %v517 = vadd.s32 %v355, 40
        %v518 = vadd.s32 %v356, 40
        %v519 = vadd.s32 %v357, 40
        %v520 = vadd.s32 %v358, 40
        %v521 = vadd.s32 %v359, 40
        %v522 = vadd.s32 %v360, 40
        %v523 = vadd.s32 %v361, 40
        %v524 = vadd.s32 %v362, 40
        %v525 = vadd.s32 %v363, 40
        %v526 = vadd.s32 %v364, 40
        %v527 = vadd.s32 %v365, 40
        %v528 = vadd.s32 %v366, 40
        %v529 = vadd.s32 %v367, 40
        %v530 = vadd.s32 %v368, 40
        %v531 = vadd.s32 %v369, 40
        %v532 = vadd.s32 %v370, 40
        %v533 = vadd.s32 %v371, 40
        %v534 = vadd.s32 %v372, 40
        %v535 = vadd.s32 %v373, 40
        %v536 = vadd.s32 %v374, 40
        %v537 = vadd.s32 %v375, 40
        %v538 = vadd.s32 %v376, 40
        %v539 = vadd.s32 %v377, 40
        %v540 = vadd.s32 %v378, 40
        %v541 = vadd.s32 %v379, 40
        %v542 = vadd.s32 %v380, 40
        %v543 = vadd.s32 %v381, 40
        %544 = vset.pattern.permute.xlu0 0
        %545 = vperm.xlu0 %544, %v512
        %v546 = vpop.permute.xlu0 %545
        %547 = vset.pattern.permute.xlu0 0
        %548 = vperm.xlu0 %547, %v513
        %v549 = vpop.permute.xlu0 %548
        %550 = vset.pattern.permute.xlu0 0
        %551 = vperm.xlu0 %550, %v514
        %v552 = vpop.permute.xlu0 %551
        %553 = vset.pattern.permute.xlu0 0
        %554 = vperm.xlu0 %553, %v515
        %v555 = vpop.permute.xlu0 %554
        %556 = vset.pattern.permute.xlu0 0
        %557 = vperm.xlu0 %556, %v516
        %v558 = vpop.permute.xlu0 %557
        %559 = vset.pattern.permute.xlu0 0
        %560 = vperm.xlu0 %559, %v517
        %v561 = vpop.permute.xlu0 %560
        %562 = vset.pattern.permute.xlu0 0
        %563 = vperm.xlu0 %562, %v518
        %v564 = vpop.permute.xlu0 %563
        %565 = vset.pattern.permute.xlu0 0
        %566 = vperm.xlu0 %565, %v519
        %v567 = vpop.permute.xlu0 %566
        %568 = vset.pattern.permute.xlu0 0
        %569 = vperm.xlu0 %568, %v520
        %v570 = vpop.permute.xlu0 %569
        %571 = vset.pattern.permute.xlu0 0
        %572 = vperm.xlu0 %571, %v521
        %v573 = vpop.permute.xlu0 %572
        %574 = vset.pattern.permute.xlu0 0
        %575 = vperm.xlu0 %574, %v522
        %v576 = vpop.permute.xlu0 %575
        %577 = vset.pattern.permute.xlu0 0
        %578 = vperm.xlu0 %577, %v523
        %v579 = vpop.permute.xlu0 %578
        %580 = vset.pattern.permute.xlu0 0
        %581 = vperm.xlu0 %580, %v524
        %v582 = vpop.permute.xlu0 %581
        %583 = vset.pattern.permute.xlu0 0
        %584 = vperm.xlu0 %583, %v525
        %v585 = vpop.permute.xlu0 %584
        %586 = vset.pattern.permute.xlu0 0
        %587 = vperm.xlu0 %586, %v526
        %v588 = vpop.permute.xlu0 %587
        %589 = vset.pattern.permute.xlu0 0
        %590 = vperm.xlu0 %589, %v527
        %v591 = vpop.permute.xlu0 %590
        %592 = vset.pattern.permute.xlu0 0
        %593 = vperm.xlu0 %592, %v528
        %v594 = vpop.permute.xlu0 %593
        %595 = vset.pattern.permute.xlu0 0
        %596 = vperm.xlu0 %595, %v529
        %v597 = vpop.permute.xlu0 %596
        %598 = vset.pattern.permute.xlu0 0
        %599 = vperm.xlu0 %598, %v530
        %v600 = vpop.permute.xlu0 %599
        %601 = vset.pattern.permute.xlu0 0
        %602 = vperm.xlu0 %601, %v531
        %v603 = vpop.permute.xlu0 %602
        %604 = vset.pattern.permute.xlu0 0
        %605 = vperm.xlu0 %604, %v532
        %v606 = vpop.permute.xlu0 %605
        %607 = vset.pattern.permute.xlu0 0
        %608 = vperm.xlu0 %607, %v533
        %v609 = vpop.permute.xlu0 %608
        %610 = vset.pattern.permute.xlu0 0
        %611 = vperm.xlu0 %610, %v534
        %v612 = vpop.permute.xlu0 %611
        %613 = vset.pattern.permute.xlu0 0
        %614 = vperm.xlu0 %613, %v535
        %v615 = vpop.permute.xlu0 %614
        %616 = vset.pattern.permute.xlu0 0
        %617 = vperm.xlu0 %616, %v536
        %v618 = vpop.permute.xlu0 %617
        %619 = vset.pattern.permute.xlu0 0
        %620 = vperm.xlu0 %619, %v537
        %v621 = vpop.permute.xlu0 %620
        %622 = vset.pattern.permute.xlu0 0
        %623 = vperm.xlu0 %622, %v538
        %v624 = vpop.permute.xlu0 %623
        %625 = vset.pattern.permute.xlu0 0
        %626 = vperm.xlu0 %625, %v539
        %v627 = vpop.permute.xlu0 %626
        %628 = vset.pattern.permute.xlu0 0
        %629 = vperm.xlu0 %628, %v540
        %v630 = vpop.permute.xlu0 %629
        %631 = vset.pattern.permute.xlu0 0
        %632 = vperm.xlu0 %631, %v541
        %v633 = vpop.permute.xlu0 %632
        %634 = vset.pattern.permute.xlu0 0
        %635 = vperm.xlu0 %634, %v542
        %v636 = vpop.permute.xlu0 %635
        %637 = vset.pattern.permute.xlu0 0
        %638 = vperm.xlu0 %637, %v543
        %v639 = vpop.permute.xlu0 %638
        %vm640 = vcmp.eq.s32.totalorder %v383, %v546
        %vm641 = vcmp.eq.s32.totalorder %v383, %v549
        %vm642 = vcmp.eq.s32.totalorder %v383, %v552
        %vm643 = vcmp.eq.s32.totalorder %v383, %v555
        %vm644 = vcmp.eq.s32.totalorder %v383, %v558
        %vm645 = vcmp.eq.s32.totalorder %v383, %v561
        %vm646 = vcmp.eq.s32.totalorder %v383, %v564
        %vm647 = vcmp.eq.s32.totalorder %v383, %v567
        %vm648 = vcmp.eq.s32.totalorder %v383, %v570
        %vm649 = vcmp.eq.s32.totalorder %v383, %v573
        %vm650 = vcmp.eq.s32.totalorder %v383, %v576
        %vm651 = vcmp.eq.s32.totalorder %v383, %v579
        %vm652 = vcmp.eq.s32.totalorder %v383, %v582
        %vm653 = vcmp.eq.s32.totalorder %v383, %v585
        %vm654 = vcmp.eq.s32.totalorder %v383, %v588
        %vm655 = vcmp.eq.s32.totalorder %v383, %v591
        %vm656 = vcmp.eq.s32.totalorder %v383, %v594
        %vm657 = vcmp.eq.s32.totalorder %v383, %v597
        %vm658 = vcmp.eq.s32.totalorder %v383, %v600
        %vm659 = vcmp.eq.s32.totalorder %v383, %v603
        %vm660 = vcmp.eq.s32.totalorder %v383, %v606
        %vm661 = vcmp.eq.s32.totalorder %v383, %v609
        %vm662 = vcmp.eq.s32.totalorder %v383, %v612
        %vm663 = vcmp.eq.s32.totalorder %v383, %v615
        %vm664 = vcmp.eq.s32.totalorder %v383, %v618
        %vm665 = vcmp.eq.s32.totalorder %v383, %v621
        %vm666 = vcmp.eq.s32.totalorder %v383, %v624
        %vm667 = vcmp.eq.s32.totalorder %v383, %v627
        %vm668 = vcmp.eq.s32.totalorder %v383, %v630
        %vm669 = vcmp.eq.s32.totalorder %v383, %v633
        %vm670 = vcmp.eq.s32.totalorder %v383, %v636
        %vm671 = vcmp.eq.s32.totalorder %v383, %v639
        %vm672 = vmor %vm480, %vm640
        %vm673 = vmor %vm481, %vm641
        %vm674 = vmor %vm482, %vm642
        %vm675 = vmor %vm483, %vm643
        %vm676 = vmor %vm484, %vm644
        %vm677 = vmor %vm485, %vm645
        %vm678 = vmor %vm486, %vm646
        %vm679 = vmor %vm487, %vm647
        %vm680 = vmor %vm488, %vm648
        %vm681 = vmor %vm489, %vm649
        %vm682 = vmor %vm490, %vm650
        %vm683 = vmor %vm491, %vm651
        %vm684 = vmor %vm492, %vm652
        %vm685 = vmor %vm493, %vm653
        %vm686 = vmor %vm494, %vm654
        %vm687 = vmor %vm495, %vm655
        %vm688 = vmor %vm496, %vm656
        %vm689 = vmor %vm497, %vm657
        %vm690 = vmor %vm498, %vm658
        %vm691 = vmor %vm499, %vm659
        %vm692 = vmor %vm500, %vm660
        %vm693 = vmor %vm501, %vm661
        %vm694 = vmor %vm502, %vm662
        %vm695 = vmor %vm503, %vm663
        %vm696 = vmor %vm504, %vm664
        %vm697 = vmor %vm505, %vm665
        %vm698 = vmor %vm506, %vm666
        %vm699 = vmor %vm507, %vm667
        %vm700 = vmor %vm508, %vm668
        %vm701 = vmor %vm509, %vm669
        %vm702 = vmor %vm510, %vm670
        %vm703 = vmor %vm511, %vm671
        %v704 = vsel %vm672, 1, 0
        %v705 = vsel %vm673, 1, 0
        %v706 = vsel %vm674, 1, 0
        %v707 = vsel %vm675, 1, 0
        %v708 = vsel %vm676, 1, 0
        %v709 = vsel %vm677, 1, 0
        %v710 = vsel %vm678, 1, 0
        %v711 = vsel %vm679, 1, 0
        %v712 = vsel %vm680, 1, 0
        %v713 = vsel %vm681, 1, 0
        %v714 = vsel %vm682, 1, 0
        %v715 = vsel %vm683, 1, 0
        %v716 = vsel %vm684, 1, 0
        %v717 = vsel %vm685, 1, 0
        %v718 = vsel %vm686, 1, 0
        %v719 = vsel %vm687, 1, 0
        %v720 = vsel %vm688, 1, 0
        %v721 = vsel %vm689, 1, 0
        %v722 = vsel %vm690, 1, 0
        %v723 = vsel %vm691, 1, 0
        %v724 = vsel %vm692, 1, 0
        %v725 = vsel %vm693, 1, 0
        %v726 = vsel %vm694, 1, 0
        %v727 = vsel %vm695, 1, 0
        %v728 = vsel %vm696, 1, 0
        %v729 = vsel %vm697, 1, 0
        %v730 = vsel %vm698, 1, 0
        %v731 = vsel %vm699, 1, 0
        %v732 = vsel %vm700, 1, 0
        %v733 = vsel %vm701, 1, 0
        %v734 = vsel %vm702, 1, 0
        %v735 = vsel %vm703, 1, 0
        %v736 = vcvt.s32.f32 %v704
        %v737 = vcvt.s32.f32 %v705
        %v738 = vcvt.s32.f32 %v706
        %v739 = vcvt.s32.f32 %v707
        %v740 = vcvt.s32.f32 %v708
        %v741 = vcvt.s32.f32 %v709
        %v742 = vcvt.s32.f32 %v710
        %v743 = vcvt.s32.f32 %v711
        %v744 = vcvt.s32.f32 %v712
        %v745 = vcvt.s32.f32 %v713
        %v746 = vcvt.s32.f32 %v714
        %v747 = vcvt.s32.f32 %v715
        %v748 = vcvt.s32.f32 %v716
        %v749 = vcvt.s32.f32 %v717
        %v750 = vcvt.s32.f32 %v718
        %v751 = vcvt.s32.f32 %v719
        %v752 = vcvt.s32.f32 %v720
        %v753 = vcvt.s32.f32 %v721
        %v754 = vcvt.s32.f32 %v722
        %v755 = vcvt.s32.f32 %v723
        %v756 = vcvt.s32.f32 %v724
        %v757 = vcvt.s32.f32 %v725
        %v758 = vcvt.s32.f32 %v726
        %v759 = vcvt.s32.f32 %v727
        %v760 = vcvt.s32.f32 %v728
        %v761 = vcvt.s32.f32 %v729
        %v762 = vcvt.s32.f32 %v730
        %v763 = vcvt.s32.f32 %v731
        %v764 = vcvt.s32.f32 %v732
        %v765 = vcvt.s32.f32 %v733
        %v766 = vcvt.s32.f32 %v734
        %v767 = vcvt.s32.f32 %v735
        %v768 = vld [vmem:[%s312] sm:$0xff]
        %v769 = vld [vmem:[%s312 + $0x8] sm:$0xff]
        %v770 = vld [vmem:[%s312 + $0x10] sm:$0xff]
        %v771 = vld [vmem:[%s312 + $0x18] sm:$0xff]
        %v772 = vld [vmem:[%s312 + $0x20] sm:$0xff]
        %v773 = vld [vmem:[%s312 + $0x28] sm:$0xff]
        %v774 = vld [vmem:[%s312 + $0x30] sm:$0xff]
        %v775 = vld [vmem:[%s312 + $0x38] sm:$0xff]
        %v776 = vld [vmem:[%s312 + $0x40] sm:$0xff]
        %v777 = vld [vmem:[%s312 + $0x48] sm:$0xff]
        %v778 = vld [vmem:[%s307] sm:$0xff]
        %v779 = vld [vmem:[%s307 + $0x8] sm:$0xff]
        %v780 = vld [vmem:[%s307 + $0x10] sm:$0xff]
        %v781 = vld [vmem:[%s307 + $0x18] sm:$0xff]
        %v782 = vld [vmem:[%s307 + $0x20] sm:$0xff]
        %v783 = vld [vmem:[%s307 + $0x28] sm:$0xff]
        %v784 = vld [vmem:[%s307 + $0x30] sm:$0xff]
        %v785 = vld [vmem:[%s307 + $0x38] sm:$0xff]
        %v786 = vld [vmem:[%s307 + $0x40] sm:$0xff]
        %v787 = vld [vmem:[%s307 + $0x48] sm:$0xff]
        %v788 = vld [vmem:[%s307 + $0x50] sm:$0xff]
        %v789 = vld [vmem:[%s307 + $0x58] sm:$0xff]
        %v790 = vld [vmem:[%s307 + $0x60] sm:$0xff]
        %v791 = vld [vmem:[%s307 + $0x68] sm:$0xff]
        %v792 = vld [vmem:[%s307 + $0x70] sm:$0xff]
        %v793 = vld [vmem:[%s307 + $0x78] sm:$0xff]
        %v794 = vld [vmem:[%s307 + $0x80] sm:$0xff]
        %v795 = vld [vmem:[%s307 + $0x88] sm:$0xff]
        %v796 = vld [vmem:[%s307 + $0x90] sm:$0xff]
        %v797 = vld [vmem:[%s307 + $0x98] sm:$0xff]
        %v798 = vld [vmem:[%s307 + $0xa0] sm:$0xff]
        %v799 = vld [vmem:[%s307 + $0xa8] sm:$0xff]
        %v800 = vld [vmem:[%s307 + $0xb0] sm:$0xff]
        %v801 = vld [vmem:[%s307 + $0xb8] sm:$0xff]
        %v802 = vld [vmem:[%s307 + $0xc0] sm:$0xff]
        %v803 = vld [vmem:[%s307 + $0xc8] sm:$0xff]
        %v804 = vld [vmem:[%s307 + $0xd0] sm:$0xff]
        %v805 = vld [vmem:[%s307 + $0xd8] sm:$0xff]
        %v806 = vld [vmem:[%s307 + $0xe0] sm:$0xff]
        %v807 = vld [vmem:[%s307 + $0xe8] sm:$0xff]
        %v808 = vld [vmem:[%s307 + $0xf0] sm:$0xff]
        %v809 = vld [vmem:[%s307 + $0xf8] sm:$0xff]
        %v810 = vld [vmem:[%s316] sm:$0xff]
        %v811 = vld [vmem:[%s316 + $0x8] sm:$0xff]
        %vm812 = vcmask 130048
        %v814 = vsel %vm812, %v778, 0
        %v817 = vsel %vm812, %v779, 0
        %v820 = vsel %vm812, %v780, 0
        %v823 = vsel %vm812, %v781, 0
        %v826 = vsel %vm812, %v782, 0
        %v829 = vsel %vm812, %v783, 0
        %v832 = vsel %vm812, %v784, 0
        %v835 = vsel %vm812, %v785, 0
        %v838 = vsel %vm812, %v786, 0
        %v841 = vsel %vm812, %v787, 0
        %v844 = vsel %vm812, %v788, 0
        %v847 = vsel %vm812, %v789, 0
        %v850 = vsel %vm812, %v790, 0
        %v853 = vsel %vm812, %v791, 0
        %v856 = vsel %vm812, %v792, 0
        %v859 = vsel %vm812, %v793, 0
        %v862 = vsel %vm812, %v794, 0
        %v865 = vsel %vm812, %v795, 0
        %v868 = vsel %vm812, %v796, 0
        %v871 = vsel %vm812, %v797, 0
        %v874 = vsel %vm812, %v798, 0
        %v877 = vsel %vm812, %v799, 0
        %v880 = vsel %vm812, %v800, 0
        %v883 = vsel %vm812, %v801, 0
        %v886 = vsel %vm812, %v802, 0
        %v889 = vsel %vm812, %v803, 0
        %v892 = vsel %vm812, %v804, 0
        %v895 = vsel %vm812, %v805, 0
        %v898 = vsel %vm812, %v806, 0
        %v901 = vsel %vm812, %v807, 0
        %v904 = vsel %vm812, %v808, 0
        %v907 = vsel %vm812, %v809, 0
        %909 = vmatpush.msra.mxu0 0.0
        %910 = vmatpush.msra.mxu0 0.0
        %911 = vmatpush.msra.mxu0 0.0
        %912 = vmatpush.msra.mxu0 0.0
        %913 = vmatpush.msra.mxu0 0.0
        %914 = vmatpush.msra.mxu0 0.0
        %915 = vmatpush.msra.mxu0 0.0
        %916 = vmatpush.msra.mxu0 0.0
        %917 = vmatpush.msra.mxu0 0.0
        %918 = vmatpush.msra.mxu0 0.0
        %919 = vmatpush.msra.mxu0 0.0
        %920 = vmatpush.msra.mxu0 0.0
        %921 = vmatpush.msra.mxu0 0.0
        %922 = vmatpush.msra.mxu0 0.0
        %923 = vmatpush.msra.mxu0 %v811
        %924 = vmatpush.msra.mxu0 %v810
        %925 = vmatmul.f32.gmra.mxu0 %v814
        %v926 = vpop.f32.mrf.mxu0
        %v927 = vadd.f32 0.0, %v926
        %928 = vmatmul.f32.gmra.mxu0 %v817
        %v929 = vpop.f32.mrf.mxu0
        %v930 = vadd.f32 0.0, %v929
        %931 = vmatmul.f32.gmra.mxu0 %v820
        %v932 = vpop.f32.mrf.mxu0
        %v933 = vadd.f32 0.0, %v932
        %934 = vmatmul.f32.gmra.mxu0 %v823
        %v935 = vpop.f32.mrf.mxu0
        %v936 = vadd.f32 0.0, %v935
        %937 = vmatmul.f32.gmra.mxu0 %v826
        %v938 = vpop.f32.mrf.mxu0
        %v939 = vadd.f32 0.0, %v938
        %940 = vmatmul.f32.gmra.mxu0 %v829
        %v941 = vpop.f32.mrf.mxu0
        %v942 = vadd.f32 0.0, %v941
        %943 = vmatmul.f32.gmra.mxu0 %v832
        %v944 = vpop.f32.mrf.mxu0
        %v945 = vadd.f32 0.0, %v944
        %946 = vmatmul.f32.gmra.mxu0 %v835
        %v947 = vpop.f32.mrf.mxu0
        %v948 = vadd.f32 0.0, %v947
        %949 = vmatmul.f32.gmra.mxu0 %v838
        %v950 = vpop.f32.mrf.mxu0
        %v951 = vadd.f32 0.0, %v950
        %952 = vmatmul.f32.gmra.mxu0 %v841
        %v953 = vpop.f32.mrf.mxu0
        %v954 = vadd.f32 0.0, %v953
        %955 = vmatmul.f32.gmra.mxu0 %v844
        %v956 = vpop.f32.mrf.mxu0
        %v957 = vadd.f32 0.0, %v956
        %958 = vmatmul.f32.gmra.mxu0 %v847
        %v959 = vpop.f32.mrf.mxu0
        %v960 = vadd.f32 0.0, %v959
        %961 = vmatmul.f32.gmra.mxu0 %v850
        %v962 = vpop.f32.mrf.mxu0
        %v963 = vadd.f32 0.0, %v962
        %964 = vmatmul.f32.gmra.mxu0 %v853
        %v965 = vpop.f32.mrf.mxu0
        %v966 = vadd.f32 0.0, %v965
        %967 = vmatmul.f32.gmra.mxu0 %v856
        %v968 = vpop.f32.mrf.mxu0
        %v969 = vadd.f32 0.0, %v968
        %970 = vmatmul.f32.gmra.mxu0 %v859
        %v971 = vpop.f32.mrf.mxu0
        %v972 = vadd.f32 0.0, %v971
        %973 = vmatmul.f32.gmra.mxu0 %v862
        %v974 = vpop.f32.mrf.mxu0
        %v975 = vadd.f32 0.0, %v974
        %976 = vmatmul.f32.gmra.mxu0 %v865
        %v977 = vpop.f32.mrf.mxu0
        %v978 = vadd.f32 0.0, %v977
        %979 = vmatmul.f32.gmra.mxu0 %v868
        %v980 = vpop.f32.mrf.mxu0
        %v981 = vadd.f32 0.0, %v980
        %982 = vmatmul.f32.gmra.mxu0 %v871
        %v983 = vpop.f32.mrf.mxu0
        %v984 = vadd.f32 0.0, %v983
        %985 = vmatmul.f32.gmra.mxu0 %v874
        %v986 = vpop.f32.mrf.mxu0
        %v987 = vadd.f32 0.0, %v986
        %988 = vmatmul.f32.gmra.mxu0 %v877
        %v989 = vpop.f32.mrf.mxu0
        %v990 = vadd.f32 0.0, %v989
        %991 = vmatmul.f32.gmra.mxu0 %v880
        %v992 = vpop.f32.mrf.mxu0
        %v993 = vadd.f32 0.0, %v992
        %994 = vmatmul.f32.gmra.mxu0 %v883
        %v995 = vpop.f32.mrf.mxu0
        %v996 = vadd.f32 0.0, %v995
        %997 = vmatmul.f32.gmra.mxu0 %v886
        %v998 = vpop.f32.mrf.mxu0
        %v999 = vadd.f32 0.0, %v998
        %1000 = vmatmul.f32.gmra.mxu0 %v889
        %v1001 = vpop.f32.mrf.mxu0
        %v1002 = vadd.f32 0.0, %v1001
        %1003 = vmatmul.f32.gmra.mxu0 %v892
        %v1004 = vpop.f32.mrf.mxu0
        %v1005 = vadd.f32 0.0, %v1004
        %1006 = vmatmul.f32.gmra.mxu0 %v895
        %v1007 = vpop.f32.mrf.mxu0
        %v1008 = vadd.f32 0.0, %v1007
        %1009 = vmatmul.f32.gmra.mxu0 %v898
        %v1010 = vpop.f32.mrf.mxu0
        %v1011 = vadd.f32 0.0, %v1010
        %1012 = vmatmul.f32.gmra.mxu0 %v901
        %v1013 = vpop.f32.mrf.mxu0
        %v1014 = vadd.f32 0.0, %v1013
        %1015 = vmatmul.f32.gmra.mxu0 %v904
        %v1016 = vpop.f32.mrf.mxu0
        %v1017 = vadd.f32 0.0, %v1016
        %1018 = vmatmul.f32.gmra.mxu0 %v907
        %v1019 = vpop.f32.mrf.mxu0
        %v1020 = vadd.f32 0.0, %v1019
        %1021 = vdwg.mxu0
        %vm1022 = vcmask 654336
        %v1024 = vsel %vm1022, %v736, 0
        %v1027 = vsel %vm1022, %v737, 0
        %v1030 = vsel %vm1022, %v738, 0
        %v1033 = vsel %vm1022, %v739, 0
        %v1036 = vsel %vm1022, %v740, 0
        %v1039 = vsel %vm1022, %v741, 0
        %v1042 = vsel %vm1022, %v742, 0
        %v1045 = vsel %vm1022, %v743, 0
        %v1048 = vsel %vm1022, %v744, 0
        %v1051 = vsel %vm1022, %v745, 0
        %v1054 = vsel %vm1022, %v746, 0
        %v1057 = vsel %vm1022, %v747, 0
        %v1060 = vsel %vm1022, %v748, 0
        %v1063 = vsel %vm1022, %v749, 0
        %v1066 = vsel %vm1022, %v750, 0
        %v1069 = vsel %vm1022, %v751, 0
        %v1072 = vsel %vm1022, %v752, 0
        %v1075 = vsel %vm1022, %v753, 0
        %v1078 = vsel %vm1022, %v754, 0
        %v1081 = vsel %vm1022, %v755, 0
        %v1084 = vsel %vm1022, %v756, 0
        %v1087 = vsel %vm1022, %v757, 0
        %v1090 = vsel %vm1022, %v758, 0
        %v1093 = vsel %vm1022, %v759, 0
        %v1096 = vsel %vm1022, %v760, 0
        %v1099 = vsel %vm1022, %v761, 0
        %v1102 = vsel %vm1022, %v762, 0
        %v1105 = vsel %vm1022, %v763, 0
        %v1108 = vsel %vm1022, %v764, 0
        %v1111 = vsel %vm1022, %v765, 0
        %v1114 = vsel %vm1022, %v766, 0
        %v1117 = vsel %vm1022, %v767, 0
        %1119 = vmatpush.msra.mxu0 0.0
        %1120 = vmatpush.msra.mxu0 0.0
        %1121 = vmatpush.msra.mxu0 0.0
        %1122 = vmatpush.msra.mxu0 0.0
        %1123 = vmatpush.msra.mxu0 0.0
        %1124 = vmatpush.msra.mxu0 0.0
        %1125 = vmatpush.msra.mxu0 %v777
        %1126 = vmatpush.msra.mxu0 %v776
        %1127 = vmatpush.msra.mxu0 %v775
        %1128 = vmatpush.msra.mxu0 %v774
        %1129 = vmatpush.msra.mxu0 %v773
        %1130 = vmatpush.msra.mxu0 %v772
        %1131 = vmatpush.msra.mxu0 %v771
        %1132 = vmatpush.msra.mxu0 %v770
        %1133 = vmatpush.msra.mxu0 %v769
        %1134 = vmatpush.msra.mxu0 %v768
        %1135 = vmatmul.f32.gmra.mxu0 %v1024
        %v1136 = vpop.f32.mrf.mxu0
        %v1137 = vadd.f32 %v927, %v1136
        %1138 = vmatmul.f32.gmra.mxu0 %v1027
        %v1139 = vpop.f32.mrf.mxu0
        %v1140 = vadd.f32 %v930, %v1139
        %1141 = vmatmul.f32.gmra.mxu0 %v1030
        %v1142 = vpop.f32.mrf.mxu0
        %v1143 = vadd.f32 %v933, %v1142
        %1144 = vmatmul.f32.gmra.mxu0 %v1033
        %v1145 = vpop.f32.mrf.mxu0
        %v1146 = vadd.f32 %v936, %v1145
        %1147 = vmatmul.f32.gmra.mxu0 %v1036
        %v1148 = vpop.f32.mrf.mxu0
        %v1149 = vadd.f32 %v939, %v1148
        %1150 = vmatmul.f32.gmra.mxu0 %v1039
        %v1151 = vpop.f32.mrf.mxu0
        %v1152 = vadd.f32 %v942, %v1151
        %1153 = vmatmul.f32.gmra.mxu0 %v1042
        %v1154 = vpop.f32.mrf.mxu0
        %v1155 = vadd.f32 %v945, %v1154
        %1156 = vmatmul.f32.gmra.mxu0 %v1045
        %v1157 = vpop.f32.mrf.mxu0
        %v1158 = vadd.f32 %v948, %v1157
        %1159 = vmatmul.f32.gmra.mxu0 %v1048
        %v1160 = vpop.f32.mrf.mxu0
        %v1161 = vadd.f32 %v951, %v1160
        %1162 = vmatmul.f32.gmra.mxu0 %v1051
        %v1163 = vpop.f32.mrf.mxu0
        %v1164 = vadd.f32 %v954, %v1163
        %1165 = vmatmul.f32.gmra.mxu0 %v1054
        %v1166 = vpop.f32.mrf.mxu0
        %v1167 = vadd.f32 %v957, %v1166
        %1168 = vmatmul.f32.gmra.mxu0 %v1057
        %v1169 = vpop.f32.mrf.mxu0
        %v1170 = vadd.f32 %v960, %v1169
        %1171 = vmatmul.f32.gmra.mxu0 %v1060
        %v1172 = vpop.f32.mrf.mxu0
        %v1173 = vadd.f32 %v963, %v1172
        %1174 = vmatmul.f32.gmra.mxu0 %v1063
        %v1175 = vpop.f32.mrf.mxu0
        %v1176 = vadd.f32 %v966, %v1175
        %1177 = vmatmul.f32.gmra.mxu0 %v1066
        %v1178 = vpop.f32.mrf.mxu0
        %v1179 = vadd.f32 %v969, %v1178
        %1180 = vmatmul.f32.gmra.mxu0 %v1069
        %v1181 = vpop.f32.mrf.mxu0
        %v1182 = vadd.f32 %v972, %v1181
        %1183 = vmatmul.f32.gmra.mxu0 %v1072
        %v1184 = vpop.f32.mrf.mxu0
        %v1185 = vadd.f32 %v975, %v1184
        %1186 = vmatmul.f32.gmra.mxu0 %v1075
        %v1187 = vpop.f32.mrf.mxu0
        %v1188 = vadd.f32 %v978, %v1187
        %1189 = vmatmul.f32.gmra.mxu0 %v1078
        %v1190 = vpop.f32.mrf.mxu0
        %v1191 = vadd.f32 %v981, %v1190
        %1192 = vmatmul.f32.gmra.mxu0 %v1081
        %v1193 = vpop.f32.mrf.mxu0
        %v1194 = vadd.f32 %v984, %v1193
        %1195 = vmatmul.f32.gmra.mxu0 %v1084
        %v1196 = vpop.f32.mrf.mxu0
        %v1197 = vadd.f32 %v987, %v1196
        %1198 = vmatmul.f32.gmra.mxu0 %v1087
        %v1199 = vpop.f32.mrf.mxu0
        %v1200 = vadd.f32 %v990, %v1199
        %1201 = vmatmul.f32.gmra.mxu0 %v1090
        %v1202 = vpop.f32.mrf.mxu0
        %v1203 = vadd.f32 %v993, %v1202
        %1204 = vmatmul.f32.gmra.mxu0 %v1093
        %v1205 = vpop.f32.mrf.mxu0
        %v1206 = vadd.f32 %v996, %v1205
        %1207 = vmatmul.f32.gmra.mxu0 %v1096
        %v1208 = vpop.f32.mrf.mxu0
        %v1209 = vadd.f32 %v999, %v1208
        %1210 = vmatmul.f32.gmra.mxu0 %v1099
        %v1211 = vpop.f32.mrf.mxu0
        %v1212 = vadd.f32 %v1002, %v1211
        %1213 = vmatmul.f32.gmra.mxu0 %v1102
        %v1214 = vpop.f32.mrf.mxu0
        %v1215 = vadd.f32 %v1005, %v1214
        %1216 = vmatmul.f32.gmra.mxu0 %v1105
        %v1217 = vpop.f32.mrf.mxu0
        %v1218 = vadd.f32 %v1008, %v1217
        %1219 = vmatmul.f32.gmra.mxu0 %v1108
        %v1220 = vpop.f32.mrf.mxu0
        %v1221 = vadd.f32 %v1011, %v1220
        %1222 = vmatmul.f32.gmra.mxu0 %v1111
        %v1223 = vpop.f32.mrf.mxu0
        %v1224 = vadd.f32 %v1014, %v1223
        %1225 = vmatmul.f32.gmra.mxu0 %v1114
        %v1226 = vpop.f32.mrf.mxu0
        %v1227 = vadd.f32 %v1017, %v1226
        %1228 = vmatmul.f32.gmra.mxu0 %v1117
        %v1229 = vpop.f32.mrf.mxu0
        %v1230 = vadd.f32 %v1020, %v1229
        %1231 = vdwg.mxu0
        %1232 = vst [vmem:[%s290] sm:$0xff] %v1137
        %1233 = vst [vmem:[%s290 + $0x8] sm:$0xff] %v1140
        %1234 = vst [vmem:[%s290 + $0x10] sm:$0xff] %v1143
        %1235 = vst [vmem:[%s290 + $0x18] sm:$0xff] %v1146
        %1236 = vst [vmem:[%s290 + $0x20] sm:$0xff] %v1149
        %1237 = vst [vmem:[%s290 + $0x28] sm:$0xff] %v1152
        %1238 = vst [vmem:[%s290 + $0x30] sm:$0xff] %v1155
        %1239 = vst [vmem:[%s290 + $0x38] sm:$0xff] %v1158
        %1240 = vst [vmem:[%s290 + $0x40] sm:$0xff] %v1161
        %1241 = vst [vmem:[%s290 + $0x48] sm:$0xff] %v1164
        %1242 = vst [vmem:[%s290 + $0x50] sm:$0xff] %v1167
        %1243 = vst [vmem:[%s290 + $0x58] sm:$0xff] %v1170
        %1244 = vst [vmem:[%s290 + $0x60] sm:$0xff] %v1173
        %1245 = vst [vmem:[%s290 + $0x68] sm:$0xff] %v1176
        %1246 = vst [vmem:[%s290 + $0x70] sm:$0xff] %v1179
        %1247 = vst [vmem:[%s290 + $0x78] sm:$0xff] %v1182
        %1248 = vst [vmem:[%s290 + $0x80] sm:$0xff] %v1185
        %1249 = vst [vmem:[%s290 + $0x88] sm:$0xff] %v1188
        %1250 = vst [vmem:[%s290 + $0x90] sm:$0xff] %v1191
        %1251 = vst [vmem:[%s290 + $0x98] sm:$0xff] %v1194
        %1252 = vst [vmem:[%s290 + $0xa0] sm:$0xff] %v1197
        %1253 = vst [vmem:[%s290 + $0xa8] sm:$0xff] %v1200
        %1254 = vst [vmem:[%s290 + $0xb0] sm:$0xff] %v1203
        %1255 = vst [vmem:[%s290 + $0xb8] sm:$0xff] %v1206
        %1256 = vst [vmem:[%s290 + $0xc0] sm:$0xff] %v1209
        %1257 = vst [vmem:[%s290 + $0xc8] sm:$0xff] %v1212
        %1258 = vst [vmem:[%s290 + $0xd0] sm:$0xff] %v1215
        %1259 = vst [vmem:[%s290 + $0xd8] sm:$0xff] %v1218
        %1260 = vst [vmem:[%s290 + $0xe0] sm:$0xff] %v1221
        %1261 = vst [vmem:[%s290 + $0xe8] sm:$0xff] %v1224
        %1262 = vst [vmem:[%s290 + $0xf0] sm:$0xff] %v1227
        %1263 = vst [vmem:[%s290 + $0xf8] sm:$0xff] %v1230
        %s1264 = sand.u32 %s171, 1
        %s1265 = scalar_lea.sflag [#allocation3], %s1264
        %s1266 = sand.u32 %s171, 1
        %s1267 = smul.addr %s1266, 256
        %s1268 = scalar_lea.vmem [#allocation2], %s1267
        // Predicated region
        $region41: #{tpu_custom_call.1} parent=39 // pred_check
          %p1269 = pneg %p181
        $region42: #{tpu_custom_call.1} parent=39 // pred_check_branch
          %1271 = sbr.rel (%p1269) target = $region44
        $region43: #{tpu_custom_call.1} parent=39 // pred_region
          %s1272 = smul.u32 32, %s23
          %1274 = vsyncadd %s1265, 0
          %s1275 = sadd.s32 %s24, %s1272
          %s1276 = smul.addr %s1275, 8
          %s1277 = scalar_lea.hbm %s5, %s1276
          %s1278 = sshll.u32 %s1268, 4
          %s1279 = int_to_ptr.vmem [resolvable:$true] %s1278
          %s1280 = sshll.u32 %s1277, 4
          %s1281 = int_to_ptr.hbm [resolvable:$true] %s1280
          %1286 = dma.vmem_to_hbm [thread:$0]  %s1279, 4096, %s1281, %s1265, 128, 128, 8
        $region44: #{tpu_custom_call.1} parent=39 // pred_fallthru
          _
      $region40: #{tpu_custom_call.1} parent=5 // pred_fallthru
        _
      %p1287 = scmp.le.s32.totalorder 2, %s14
      // Predicated region
      $region45: #{tpu_custom_call.1} parent=5 // pred_check
        %p1288 = pneg %p1287
      $region46: #{tpu_custom_call.1} parent=5 // pred_check_branch
        %1290 = sbr.rel (%p1288) target = $region48
      $region47: #{tpu_custom_call.1} parent=5 // pred_region
        %s1291 = ssub.s32 %s14, 2
        // Predicated region
        $region49: #{tpu_custom_call.1} parent=47 // pred_check
          %p1292 = pneg %p187
        $region50: #{tpu_custom_call.1} parent=47 // pred_check_branch
          %1294 = sbr.rel (%p1292) target = $region52
        $region51: #{tpu_custom_call.1} parent=47 // pred_region
          %s1295 = sand.u32 %s172, 1
          %s1296 = scalar_lea.sflag [#allocation3], %s1295
          %s1297 = sand.u32 %s172, 1
          %s1298 = smul.addr %s1297, 256
          %s1299 = scalar_lea.vmem [#allocation2], %s1298
          %1301 = dma.done %s1296, 4096
        $region52: #{tpu_custom_call.1} parent=47 // pred_fallthru
          _
      $region48: #{tpu_custom_call.1} parent=5 // pred_fallthru
        _
    $region6: #{tpu_custom_call.1} parent=1 // loop_footer
      %s18 = sadd.s32 1, %s14
    $region7: #{tpu_custom_call.1} parent=1 // loop_footer_branch
      %13 = sbr.rel target = $region3
    $region8: #{tpu_custom_call.1} parent=1 // loop_exit
      _
    %1302 = vsyncpa [#allocation3], 1
    %s1303 = scalar_lea.sflag [#allocation3], 1
    %1304 = vsyncpa %s1303, 1

</llo_original>
